<compile_context>
chip_gen: v5e
topology: v5e:2x2
jax: 0.10.0
libtpu: 0.0.40
codegen_flags: <defaults>
</compile_context>

<pallas_src>
import functools

import jax
import jax.numpy as jnp
from jax.experimental import pallas as pl
from jax.experimental.pallas import tpu as pltpu


def _round_up(x: int, m: int) -> int:
    return ((x + m - 1) // m) * m


def _tokenizer_kernel(p: int, d: int, x_ref, prob_ref, mean_ref, cov_ref):
    # x_ref:    (TN, p + 2*p*d) tile in VMEM
    # prob_ref: (TN, p)
    # mean_ref: (TN, p*d)   lane-dense (128 lanes for default p=8, d=16)
    # cov_ref:  (TN, p*d)
    # Write directly from ref slices: avoids materializing the whole tile as
    # a value and re-packing it before each store.
    prob_ref[...] = x_ref[:, :p]
    mean_ref[...] = x_ref[:, p : p + p * d]
    cov_ref[...] = x_ref[:, p + p * d :]


def _derive_row_tile(n_samples: int, feat: int, p: int, d: int,
                     itemsize: int, vmem_buffer_budget_bytes: int,
                     max_row_tile: int | None) -> int:
    """Largest multiple-of-8 row tile whose double-buffered VMEM footprint
    (input + prob + mean + cov, lane-padded to 128) fits the budget."""
    lanes = lambda c: _round_up(c, 128)
    per_row = itemsize * (lanes(feat) + lanes(p) + 2 * lanes(p * d))
    per_row *= 2  # double-buffered pipeline
    tn = max(8, (vmem_buffer_budget_bytes // per_row) // 8 * 8)
    if max_row_tile is not None:
        tn = min(tn, max(8, (max_row_tile // 8) * 8))
    if n_samples <= tn:
        return n_samples  # block dim == array dim is always legal
    return tn


def prototype_tokenizer_forward(X: jax.Array, p: int = 8, *,
                                vmem_buffer_budget_bytes: int = 24 * 1024 * 1024,
                                max_row_tile: int | None = None):
    """JAX/Pallas equivalent of PrototypeTokenizer('PANTHER', 'allcat', p).forward."""
    n_samples, feat = X.shape
    d = (feat - p) // (2 * p)
    assert feat == p + 2 * p * d, "feature dim must be p + 2*p*d"

    itemsize = jnp.dtype(X.dtype).itemsize
    tn = _derive_row_tile(n_samples, feat, p, d, itemsize,
                          vmem_buffer_budget_bytes, max_row_tile)
    grid = (pl.cdiv(n_samples, tn),)

    cost = pl.CostEstimate(
        flops=0,
        transcendentals=0,
        bytes_accessed=2 * n_samples * feat * itemsize,  # read X + write outputs
    )

    kernel = functools.partial(_tokenizer_kernel, p, d)

    prob, mean_flat, cov_flat = pl.pallas_call(
        kernel,
        out_shape=(
            jax.ShapeDtypeStruct((n_samples, p), X.dtype),
            jax.ShapeDtypeStruct((n_samples, p * d), X.dtype),
            jax.ShapeDtypeStruct((n_samples, p * d), X.dtype),
        ),
        grid=grid,
        in_specs=[
            pl.BlockSpec((tn, feat), lambda i: (i, 0)),
        ],
        out_specs=(
            pl.BlockSpec((tn, p), lambda i: (i, 0)),
            pl.BlockSpec((tn, p * d), lambda i: (i, 0)),
            pl.BlockSpec((tn, p * d), lambda i: (i, 0)),
        ),
        compiler_params=pltpu.CompilerParams(
            dimension_semantics=("parallel",),
            vmem_limit_bytes=32 * 1024 * 1024,
        ),
        cost_estimate=cost,
    )(X)

    # Row-major reshape only (matches torch .reshape(-1, p, d)); no slicing.
    mean = mean_flat.reshape(n_samples, p, d)
    cov = cov_flat.reshape(n_samples, p, d)
    return prob, mean, cov


def _check(n_samples: int, p: int, d: int, key, **kwargs):
    feat = p + 2 * p * d
    X = jax.random.normal(key, (n_samples, feat), dtype=jnp.float32)

    prob, mean, cov = prototype_tokenizer_forward(X, p=p, **kwargs)
    jax.block_until_ready((prob, mean, cov))

    # Reference: plain JAX slicing (same semantics as torch module).
    prob_ref = X[:, :p]
    mean_ref = X[:, p : p * (1 + d)].reshape(-1, p, d)
    cov_ref = X[:, p * (1 + d) :].reshape(-1, p, d)

    assert prob.shape == (n_samples, p)
    assert mean.shape == (n_samples, p, d)
    assert cov.shape == (n_samples, p, d)
    assert jnp.allclose(prob, prob_ref)
    assert jnp.allclose(mean, mean_ref)
    assert jnp.allclose(cov, cov_ref)


if __name__ == "__main__":
    # Small shapes consistent with the module: p=8 prototypes, per-prototype
    # feature dim d=16 -> feature axis = p + 2*p*d = 264.
    p, d = 8, 16
    key = jax.random.PRNGKey(0)
    k1, k2 = jax.random.split(key)

    # Single-tile path (n_samples=2 -> block dim == array dim).
    _check(2, p, d, k1)

    # Multi-tile path with a partial last tile (forced tiny row tile).
    _check(20, p, d, k2, max_row_tile=8)

    print("KERNEL_OK")
</pallas_src>

<mosaic_0001>
module attributes {stable_mosaic.version = 11 : i64} {
  func.func @_tokenizer_kernel(%arg0: i32, %arg1: memref<2x264xf32, #tpu.memory_space<vmem>>, %arg2: memref<2x8xf32, #tpu.memory_space<vmem>>, %arg3: memref<2x128xf32, #tpu.memory_space<vmem>>, %arg4: memref<2x128xf32, #tpu.memory_space<vmem>>) attributes {dimension_semantics = [#tpu.dimension_semantics<parallel>], iteration_bounds = array<i64: 1>, scalar_prefetch = 0 : i64, scratch_operands = 0 : i64, tpu.core_type = #tpu.core_type<tc>, window_params = [{transform_indices = @transform_0, window_bounds = array<i64: 2, 264>}, {transform_indices = @transform_1, window_bounds = array<i64: 2, 8>}, {transform_indices = @transform_2, window_bounds = array<i64: 2, 128>}, {transform_indices = @transform_3, window_bounds = array<i64: 2, 128>}]} {
    %c0 = arith.constant 0 : index
    %c0_0 = arith.constant 0 : index
    %0 = vector.load %arg1[%c0, %c0_0] : memref<2x264xf32, #tpu.memory_space<vmem>>, vector<2x8xf32>
    %c0_1 = arith.constant 0 : index
    %c0_2 = arith.constant 0 : index
    %1 = vector.load %arg2[%c0_1, %c0_2] : memref<2x8xf32, #tpu.memory_space<vmem>>, vector<2x8xf32>
    tpu.vector_store %arg2[%c0_1, %c0_2], %0 {strides = array<i32>} : memref<2x8xf32, #tpu.memory_space<vmem>>, vector<2x8xf32>,
    %c0_3 = arith.constant 0 : index
    %c8 = arith.constant 8 : index
    %2 = vector.load %arg1[%c0_3, %c8] : memref<2x264xf32, #tpu.memory_space<vmem>>, vector<2x128xf32>
    %c0_4 = arith.constant 0 : index
    %c0_5 = arith.constant 0 : index
    %3 = vector.load %arg3[%c0_4, %c0_5] : memref<2x128xf32, #tpu.memory_space<vmem>>, vector<2x128xf32>
    tpu.vector_store %arg3[%c0_4, %c0_5], %2 {strides = array<i32>} : memref<2x128xf32, #tpu.memory_space<vmem>>, vector<2x128xf32>,
    %c0_6 = arith.constant 0 : index
    %c136 = arith.constant 136 : index
    %4 = vector.load %arg1[%c0_6, %c136] : memref<2x264xf32, #tpu.memory_space<vmem>>, vector<2x128xf32>
    %c0_7 = arith.constant 0 : index
    %c0_8 = arith.constant 0 : index
    %5 = vector.load %arg4[%c0_7, %c0_8] : memref<2x128xf32, #tpu.memory_space<vmem>>, vector<2x128xf32>
    tpu.vector_store %arg4[%c0_7, %c0_8], %4 {strides = array<i32>} : memref<2x128xf32, #tpu.memory_space<vmem>>, vector<2x128xf32>,
    return
  }
  func.func @transform_0(%arg0: i32) -> (i32, i32) {
    %c0_i32 = arith.constant 0 : i32
    %c0_i32_0 = arith.constant 0 : i32
    return %arg0, %c0_i32 : i32, i32
  }
  func.func @transform_1(%arg0: i32) -> (i32, i32) {
    %c0_i32 = arith.constant 0 : i32
    %c0_i32_0 = arith.constant 0 : i32
    return %arg0, %c0_i32 : i32, i32
  }
  func.func @transform_2(%arg0: i32) -> (i32, i32) {
    %c0_i32 = arith.constant 0 : i32
    %c0_i32_0 = arith.constant 0 : i32
    return %arg0, %c0_i32 : i32, i32
  }
  func.func @transform_3(%arg0: i32) -> (i32, i32) {
    %c0_i32 = arith.constant 0 : i32
    %c0_i32_0 = arith.constant 0 : i32
    return %arg0, %c0_i32 : i32, i32
  }
}

</mosaic_0001>

<llo_original>
// kernel: tpu_custom_call.1
$region0: #{tpu_custom_call.1}
  #allocation0 [shape = 'u32[]', space=smem, size = 0x4, offset = 0x4, fixed_abs, tag = 'smem constant byte address 0x4 - core index']
  #allocation1 [shape = 'u32[72,128]{1,0:T(1,128)}', space=vmem, size = 0x9000, scoped, tag = 'internal scratch']
  %s0 = inlined_call_operand.hbm [shape: f32[2,264], index: 0, kind: input, shape index: {}]
  %s1 = inlined_call_operand.hbm [shape: f32[2,8], index: 1, kind: output, shape index: {0}]
  %s2 = inlined_call_operand.hbm [shape: f32[2,128], index: 2, kind: output, shape index: {1}]
  %s3 = inlined_call_operand.hbm [shape: f32[2,128], index: 3, kind: output, shape index: {2}]
  %4 = xla_tuple %s1, %s2, %s3
  %s5 = sld [smem:[#allocation0]]
  $region34: #{tpu_custom_call.1} parent=0
    _
  %s7 = ssub.s32 1, %s5
  %s8 = scalar_select 0, %s7, %s5
  $region1: #{tpu_custom_call.1} parent=0
    #allocation2 [shape = 'u8[3072]{0}', space=vmem, size = 0xc00, scoped, tag = 'input window, operand 0, single buffered']
    #allocation3 [shape = 's32[1]{0}', space=sflag, size = 0x4, scoped, tag = 'scoped memory for tpu_custom_call.1']
    #allocation4 [shape = 's32[1]{0}', space=sflag, size = 0x4, scoped, tag = 'scoped memory for tpu_custom_call.1']
    #allocation5 [shape = 'u8[1024]{0}', space=vmem, size = 0x400, scoped, tag = 'output window, operand 0, single buffered']
    #allocation6 [shape = 'u8[1024]{0}', space=vmem, size = 0x400, scoped, tag = 'output window, operand 1, single buffered']
    #allocation7 [shape = 's32[1]{0}', space=sflag, size = 0x4, scoped, tag = 'scoped memory for tpu_custom_call.1']
    #allocation8 [shape = 'u8[1024]{0}', space=vmem, size = 0x400, scoped, tag = 'output window, operand 2, single buffered']
    %9 = vsyncpa [#allocation3], 0
    %10 = vsyncpa [#allocation4], 0
    %11 = vsyncpa [#allocation7], 0
    // Predicated region
    $region2: #{tpu_custom_call.1} parent=1 // pred_check
      _
    $region3: #{tpu_custom_call.1} parent=1 // pred_check_branch
      %13 = sbr.rel (0) target = $region5
    $region4: #{tpu_custom_call.1} parent=1 // pred_region
      %15 = vsyncadd [#allocation3], 0
      %s17 = sshll.u32 %s0, 4
      %s18 = int_to_ptr.hbm [resolvable:$true] %s17
      %s19 = sshll.u32 [#allocation2], 4
      %s20 = int_to_ptr.vmem [resolvable:$true] %s19
      %22 = dma.hbm_to_vmem [thread:$0]  %s18, 96, %s20, [#allocation3]
    $region5: #{tpu_custom_call.1} parent=1 // pred_fallthru
      _
    // Predicated region
    $region6: #{tpu_custom_call.1} parent=1 // pred_check
      _
    $region7: #{tpu_custom_call.1} parent=1 // pred_check_branch
      %24 = sbr.rel (0) target = $region9
    $region8: #{tpu_custom_call.1} parent=1 // pred_region
      %26 = dma.done [#allocation3], 96
    $region9: #{tpu_custom_call.1} parent=1 // pred_fallthru
      _
    %v27 = vld [vmem:[#allocation2] sm:$0x3]
    %vm28 = vcmask 58368
    %29 = vst.msk [vmem:[#allocation5] sm:$0x3] %vm28, %v27
    %v30 = vld [vmem:[#allocation2] sm:$0xf]
    %32 = vst [vmem:[#allocation1] ss:$4 sm:$0xff] %v30
    %v33 = vld.sshfl [vmem:[#allocation1] sm:$0xff pattern:$0x73625140]
    %v34 = vld.sshfl [vmem:[#allocation1 + $0x8] sm:$0xff pattern:$0x73625140]
    %35 = vrot.lane.b32.xlu0 %v33, 120
    %v36 = vpop.permute.xlu0 %35
    %37 = vrot.lane.b32.xlu0 %v34, 120
    %v38 = vpop.permute.xlu0 %37
    %vm39 = vcmask 982016
    %v40 = vsel %vm39, %v36, %v38
    %42 = vst [vmem:[#allocation6] sm:$0x3] %v40
    %v43 = vld [vmem:[#allocation2 + $0x2] sm:$0xf]
    %45 = vst [vmem:[#allocation1] ss:$4 sm:$0xff] %v43
    %v46 = vld.sshfl [vmem:[#allocation1] sm:$0xff pattern:$0x73625140]
    %v47 = vld.sshfl [vmem:[#allocation1 + $0x8] sm:$0xff pattern:$0x73625140]
    %48 = vrot.lane.b32.xlu0 %v46, 120
    %v49 = vpop.permute.xlu0 %48
    %50 = vrot.lane.b32.xlu0 %v47, 120
    %v51 = vpop.permute.xlu0 %50
    %v52 = vsel %vm39, %v49, %v51
    %54 = vst [vmem:[#allocation8] sm:$0x3] %v52
    // Predicated region
    $region10: #{tpu_custom_call.1} parent=1 // pred_check
      _
    $region11: #{tpu_custom_call.1} parent=1 // pred_check_branch
      %56 = sbr.rel (0) target = $region13
    $region12: #{tpu_custom_call.1} parent=1 // pred_region
      %58 = vsyncadd [#allocation4], 0
      %s60 = sshll.u32 [#allocation5], 4
      %s61 = int_to_ptr.vmem [resolvable:$true] %s60
      %s62 = sshll.u32 %s1, 4
      %s63 = int_to_ptr.hbm [resolvable:$true] %s62
      %65 = dma.vmem_to_hbm [thread:$0]  %s61, 32, %s63, [#allocation4]
    $region13: #{tpu_custom_call.1} parent=1 // pred_fallthru
      _
    // Predicated region
    $region14: #{tpu_custom_call.1} parent=1 // pred_check
      _
    $region15: #{tpu_custom_call.1} parent=1 // pred_check_branch
      %67 = sbr.rel (0) target = $region17
    $region16: #{tpu_custom_call.1} parent=1 // pred_region
      %69 = vsyncadd [#allocation7], 0
      %s71 = sshll.u32 [#allocation6], 4
      %s72 = int_to_ptr.vmem [resolvable:$true] %s71
      %s73 = sshll.u32 %s2, 4
      %s74 = int_to_ptr.hbm [resolvable:$true] %s73
      %76 = dma.vmem_to_hbm [thread:$0]  %s72, 32, %s74, [#allocation7]
    $region17: #{tpu_custom_call.1} parent=1 // pred_fallthru
      _
    // Predicated region
    $region18: #{tpu_custom_call.1} parent=1 // pred_check
      _
    $region19: #{tpu_custom_call.1} parent=1 // pred_check_branch
      %78 = sbr.rel (0) target = $region21
    $region20: #{tpu_custom_call.1} parent=1 // pred_region
      %80 = vsyncadd [#allocation7], 0
      %s82 = sshll.u32 [#allocation8], 4
      %s83 = int_to_ptr.vmem [resolvable:$true] %s82
      %s84 = sshll.u32 %s3, 4
      %s85 = int_to_ptr.hbm [resolvable:$true] %s84
      %87 = dma.vmem_to_hbm [thread:$0]  %s83, 32, %s85, [#allocation7]
    $region21: #{tpu_custom_call.1} parent=1 // pred_fallthru
      _
    // Predicated region
    $region22: #{tpu_custom_call.1} parent=1 // pred_check
      _
    $region23: #{tpu_custom_call.1} parent=1 // pred_check_branch
      %89 = sbr.rel (0) target = $region25
    $region24: #{tpu_custom_call.1} parent=1 // pred_region
      %91 = dma.done [#allocation4], 32
    $region25: #{tpu_custom_call.1} parent=1 // pred_fallthru
      _
    // Predicated region
    $region26: #{tpu_custom_call.1} parent=1 // pred_check
      _
    $region27: #{tpu_custom_call.1} parent=1 // pred_check_branch
      %93 = sbr.rel (0) target = $region29
    $region28: #{tpu_custom_call.1} parent=1 // pred_region
      %95 = dma.done [#allocation7], 32
    $region29: #{tpu_custom_call.1} parent=1 // pred_fallthru
      _
    // Predicated region
    $region30: #{tpu_custom_call.1} parent=1 // pred_check
      _
    $region31: #{tpu_custom_call.1} parent=1 // pred_check_branch
      %97 = sbr.rel (0) target = $region33
    $region32: #{tpu_custom_call.1} parent=1 // pred_region
      %99 = dma.done [#allocation7], 32
    $region33: #{tpu_custom_call.1} parent=1 // pred_fallthru
      _
    %100 = vsyncpa [#allocation3], 1
    %101 = vsyncpa [#allocation4], 1
    %102 = vsyncpa [#allocation7], 1

</llo_original>
